<compile_context>
chip_gen: v5e
topology: v5e:2x2
jax: 0.10.0
libtpu: 0.0.40
codegen_flags: <defaults>
</compile_context>

<pallas_src>
import functools
import math

import jax
import jax.numpy as jnp
from jax import lax
from jax.experimental import pallas as pl
from jax.experimental.pallas import tpu as pltpu


# ----------------------------------------------------------------------------
# Kernel 1: backbone patch-conv as transposed matmul + bias + ReLU
#   wt_ref:  [N, K]   (W^T, resident across the grid)
#   b_ref:   [N, 1]   (bias column, resident)
#   p_ref:   [K, tm]  (streamed patch tile, lane-dense along M)
#   out_ref: [N, tm]  (lane-dense output tile)
# ----------------------------------------------------------------------------
def _backbone_matmul_kernel(wt_ref, b_ref, p_ref, out_ref):
    acc = jnp.dot(wt_ref[...], p_ref[...], preferred_element_type=jnp.float32)
    acc = acc + b_ref[...]                       # broadcast bias over columns (M)
    out_ref[...] = jnp.maximum(acc, 0.0).astype(out_ref.dtype)


# ----------------------------------------------------------------------------
# Kernel 2: PositionEmbeddingSine (normalize=True), all-valid mask.
# Lane-dense layout: out_ref is [C, H*W]; batch-independent (computed once, cached).
# ----------------------------------------------------------------------------
def _pos_embed_sine_kernel(out_ref, *, H, W):
    C, HW = out_ref.shape
    npf = C // 2
    eps = 1e-6
    scale = 2.0 * math.pi
    temperature = 10000.0

    c = lax.broadcasted_iota(jnp.int32, (C, HW), 0)
    hw = lax.broadcasted_iota(jnp.int32, (C, HW), 1)
    i = (hw // W).astype(jnp.float32)            # spatial row index
    j = (hw % W).astype(jnp.float32)             # spatial col index

    # cumsum of all-ones mask -> (index + 1); normalized by last row/col value
    y_embed = (i + 1.0) / (float(H) + eps) * scale
    x_embed = (j + 1.0) / (float(W) + eps) * scale

    is_y = c < npf
    cc = jnp.where(is_y, c, c - npf)             # channel index within y/x group
    # dim_t = temperature ** (2 * (cc // 2) / num_pos_feats)
    expo = 2.0 * (cc // 2).astype(jnp.float32) / float(npf)
    dim_t = jnp.exp(expo * math.log(temperature))

    val = jnp.where(is_y, y_embed, x_embed) / dim_t
    pos = jnp.where((cc % 2) == 0, jnp.sin(val), jnp.cos(val))
    out_ref[...] = pos.astype(out_ref.dtype)


# ----------------------------------------------------------------------------
# Wrapper (glue in plain JAX: im2col layout, reshapes, parameter setup, caching)
# ----------------------------------------------------------------------------
class BackboneWrapperPallas:
    def __init__(self, cin=3, cout=32, patch=2, dtype=jnp.float32, seed=0,
                 tile_m=512):
        self.cin, self.cout, self.patch, self.dtype = cin, cout, patch, dtype
        self.tile_m = tile_m
        self.num_channels = cout
        k0, k1 = jax.random.split(jax.random.PRNGKey(seed))
        fan_in = cin * patch * patch
        bound = 1.0 / math.sqrt(fan_in)
        # Stored directly in the transposed [N, K] / [N, 1] layouts the kernel wants.
        self.weight_t = jax.random.uniform(
            k0, (cout, fan_in), dtype, minval=-bound, maxval=bound)
        self.bias_col = jax.random.uniform(
            k1, (cout, 1), dtype, minval=-bound, maxval=bound)
        # Cache: position embedding depends only on (C, H', W'), not on batch/input.
        self._pos_cache = {}

    def _backbone(self, x):
        # x: [B, Cin, H, W] (NCHW) -> feature map [B, Cout, H//p, W//p]
        B, Cin, H, W = x.shape
        assert Cin == self.cin
        p = self.patch
        assert H % p == 0 and W % p == 0, "spatial dims must be divisible by patch"
        Hp, Wp = H // p, W // p

        # im2col with the patch-feature axis LEADING: [K = Cin*p*p, M = B*Hp*Wp]
        patches = x.reshape(B, Cin, Hp, p, Wp, p)
        patches = patches.transpose(1, 3, 5, 0, 2, 4).reshape(
            Cin * p * p, B * Hp * Wp)

        K, M = patches.shape
        N = self.cout
        # tm: multiple of 128 (or the full M when M < tile_m) to stay lane-aligned.
        tm = min(self.tile_m, M)
        grid = (pl.cdiv(M, tm),)

        out2d = pl.pallas_call(
            _backbone_matmul_kernel,
            out_shape=jax.ShapeDtypeStruct((N, M), self.dtype),
            grid_spec=pltpu.PrefetchScalarGridSpec(
                num_scalar_prefetch=0,
                grid=grid,
                in_specs=[
                    pl.BlockSpec((N, K), lambda i: (0, 0)),    # W^T, resident
                    pl.BlockSpec((N, 1), lambda i: (0, 0)),    # bias, resident
                    pl.BlockSpec((K, tm), lambda i: (0, i)),   # patches, streamed
                ],
                out_specs=pl.BlockSpec((N, tm), lambda i: (0, i)),
            ),
            compiler_params=pltpu.CompilerParams(
                dimension_semantics=("parallel",)),   # shards across TCs on v7x
        )(self.weight_t, self.bias_col, patches)

        # [Cout, B*Hp*Wp] -> [B, Cout, Hp, Wp]: leading-dim permute only (cheap).
        return out2d.reshape(N, B, Hp, Wp).transpose(1, 0, 2, 3)

    def _position_embedding(self, feat):
        B, C, H, W = feat.shape
        key = (C, H, W)
        if key not in self._pos_cache:
            pos2d = pl.pallas_call(
                functools.partial(_pos_embed_sine_kernel, H=H, W=W),
                out_shape=jax.ShapeDtypeStruct((C, H * W), jnp.float32),
                out_specs=pl.BlockSpec(memory_space=pltpu.MemorySpace.VMEM),
            )()
            self._pos_cache[key] = pos2d.reshape(C, H, W)
        pos = self._pos_cache[key]
        # .to(out.dtype) + batch broadcast (free until consumed)
        return jnp.broadcast_to(pos[None], (B, C, H, W)).astype(feat.dtype)

    def __call__(self, x):
        out = self._backbone(x)
        pos = self._position_embedding(out)
        return ([out], [pos])


if __name__ == "__main__":
    key = jax.random.PRNGKey(0)
    x = jax.random.normal(key, (2, 3, 16, 16), dtype=jnp.float32)  # NCHW

    model = BackboneWrapperPallas(cin=3, cout=32, patch=2, seed=0)
    feats, poss = model(x)
    out = jax.block_until_ready(feats[0])
    pos = jax.block_until_ready(poss[0])

    assert out.shape == (2, 32, 8, 8), out.shape
    assert pos.shape == (2, 32, 8, 8), pos.shape
    assert pos.dtype == out.dtype
    assert bool(jnp.all(jnp.isfinite(out))) and bool(jnp.all(jnp.isfinite(pos)))

    # second call exercises the cached position embedding path
    feats2, poss2 = model(x)
    jax.block_until_ready(poss2[0])

    print("KERNEL_OK")
</pallas_src>

<mosaic_0001>
module attributes {stable_mosaic.version = 11 : i64} {
  func.func @_backbone_matmul_kernel(%arg0: i32, %arg1: memref<32x12xf32, #tpu.memory_space<vmem>>, %arg2: memref<32x1xf32, #tpu.memory_space<vmem>>, %arg3: memref<12x128xf32, #tpu.memory_space<vmem>>, %arg4: memref<32x128xf32, #tpu.memory_space<vmem>>) attributes {dimension_semantics = [#tpu.dimension_semantics<parallel>], iteration_bounds = array<i64: 1>, scalar_prefetch = 0 : i64, scratch_operands = 0 : i64, tpu.core_type = #tpu.core_type<tc>, window_params = [{pipeline_mode = #tpu.pipeline_mode<synchronous>, transform_indices = @transform_0, window_bounds = array<i64: 32, 12>}, {pipeline_mode = #tpu.pipeline_mode<synchronous>, transform_indices = @transform_1, window_bounds = array<i64: 32, 1>}, {transform_indices = @transform_2, window_bounds = array<i64: 12, 128>}, {transform_indices = @transform_3, window_bounds = array<i64: 32, 128>}]} {
    %c0 = arith.constant 0 : index
    %c0_0 = arith.constant 0 : index
    %0 = vector.load %arg1[%c0, %c0_0] : memref<32x12xf32, #tpu.memory_space<vmem>>, vector<32x12xf32>
    %c0_1 = arith.constant 0 : index
    %c0_2 = arith.constant 0 : index
    %1 = vector.load %arg3[%c0_1, %c0_2] : memref<12x128xf32, #tpu.memory_space<vmem>>, vector<12x128xf32>
    %cst = arith.constant dense<0.000000e+00> : vector<32x128xf32>
    %2 = tpu.matmul %0, %1, %cst {dimension_numbers = #tpu.dot_dimension_numbers<[1], [0], [0], [1], [0, 0, 1, 1], [], []>} : vector<32x12xf32>, vector<12x128xf32>, vector<32x128xf32> -> vector<32x128xf32>
    %c0_3 = arith.constant 0 : index
    %c0_4 = arith.constant 0 : index
    %3 = vector.load %arg2[%c0_3, %c0_4] : memref<32x1xf32, #tpu.memory_space<vmem>>, vector<32x1xf32>
    %4 = vector.broadcast %3 : vector<32x1xf32> to vector<32x128xf32>
    %5 = arith.addf %2, %4 : vector<32x128xf32>
    %cst_5 = arith.constant 0.000000e+00 : f32
    %6 = vector.broadcast %cst_5 : f32 to vector<32x128xf32>
    %7 = arith.maximumf %5, %6 : vector<32x128xf32>
    %c0_6 = arith.constant 0 : index
    %c0_7 = arith.constant 0 : index
    %8 = vector.load %arg4[%c0_6, %c0_7] : memref<32x128xf32, #tpu.memory_space<vmem>>, vector<32x128xf32>
    tpu.vector_store %arg4[%c0_6, %c0_7], %7 {strides = array<i32>} : memref<32x128xf32, #tpu.memory_space<vmem>>, vector<32x128xf32>,
    return
  }
  func.func @transform_0(%arg0: i32) -> (i32, i32) {
    %c0_i32 = arith.constant 0 : i32
    %c0_i32_0 = arith.constant 0 : i32
    %c0_i32_1 = arith.constant 0 : i32
    return %c0_i32, %c0_i32_0 : i32, i32
  }
  func.func @transform_1(%arg0: i32) -> (i32, i32) {
    %c0_i32 = arith.constant 0 : i32
    %c0_i32_0 = arith.constant 0 : i32
    %c0_i32_1 = arith.constant 0 : i32
    return %c0_i32, %c0_i32_0 : i32, i32
  }
  func.func @transform_2(%arg0: i32) -> (i32, i32) {
    %c0_i32 = arith.constant 0 : i32
    %c0_i32_0 = arith.constant 0 : i32
    return %c0_i32, %arg0 : i32, i32
  }
  func.func @transform_3(%arg0: i32) -> (i32, i32) {
    %c0_i32 = arith.constant 0 : i32
    %c0_i32_0 = arith.constant 0 : i32
    return %c0_i32, %arg0 : i32, i32
  }
}

</mosaic_0001>

<llo_original>
// kernel: tpu_custom_call.1
$region0: #{tpu_custom_call.1}
  #allocation0 [shape = 'u32[]', space=smem, size = 0x4, offset = 0x4, fixed_abs, tag = 'smem constant byte address 0x4 - core index']
  #allocation1 [shape = 'u32[72,128]{1,0:T(1,128)}', space=vmem, size = 0x9000, scoped, tag = 'internal scratch']
  %s0 = inlined_call_operand.vmem [shape: f32[32,12], index: 0, kind: input, shape index: {}]
  %s1 = inlined_call_operand.vmem [shape: f32[32,1], index: 1, kind: input, shape index: {}]
  %s2 = inlined_call_operand.vmem [shape: f32[12,128], index: 2, kind: input, shape index: {}]
  %s3 = inlined_call_operand.hbm [shape: f32[32,128], index: 3, kind: output, shape index: {}]
  %s4 = sld [smem:[#allocation0]]
  $region22: #{tpu_custom_call.1} parent=0
    _
  %s6 = ssub.s32 1, %s4
  %s7 = scalar_select 0, %s6, %s4
  $region1: #{tpu_custom_call.1} parent=0
    #allocation2 [shape = 'u8[16384]{0}', space=vmem, size = 0x4000, scoped, tag = 'output window, operand 0, single buffered']
    #allocation3 [shape = 's32[1]{0}', space=sflag, size = 0x4, scoped, tag = 'scoped memory for tpu_custom_call.1']
    %8 = vsyncpa [#allocation3], 0
    // Predicated region
    $region2: #{tpu_custom_call.1} parent=1 // pred_check
      _
    $region3: #{tpu_custom_call.1} parent=1 // pred_check_branch
      %10 = sbr.rel (0) target = $region5
    $region4: #{tpu_custom_call.1} parent=1 // pred_region
      _
    $region5: #{tpu_custom_call.1} parent=1 // pred_fallthru
      _
    // Predicated region
    $region6: #{tpu_custom_call.1} parent=1 // pred_check
      _
    $region7: #{tpu_custom_call.1} parent=1 // pred_check_branch
      %12 = sbr.rel (0) target = $region9
    $region8: #{tpu_custom_call.1} parent=1 // pred_region
      _
    $region9: #{tpu_custom_call.1} parent=1 // pred_fallthru
      _
    // Predicated region
    $region10: #{tpu_custom_call.1} parent=1 // pred_check
      _
    $region11: #{tpu_custom_call.1} parent=1 // pred_check_branch
      %14 = sbr.rel (0) target = $region13
    $region12: #{tpu_custom_call.1} parent=1 // pred_region
      _
    $region13: #{tpu_custom_call.1} parent=1 // pred_fallthru
      _
    %v15 = vld [vmem:[%s0] sm:$0xff]
    %v16 = vld [vmem:[%s0 + $0x8] sm:$0xff]
    %v17 = vld [vmem:[%s0 + $0x10] sm:$0xff]
    %v18 = vld [vmem:[%s0 + $0x18] sm:$0xff]
    %v19 = vld [vmem:[%s2] sm:$0xff]
    %v20 = vld [vmem:[%s2 + $0x8] sm:$0xf]
    %v21 = vld [vmem:[%s1] sm:$0xff]
    %v22 = vld [vmem:[%s1 + $0x8] sm:$0xff]
    %v23 = vld [vmem:[%s1 + $0x10] sm:$0xff]
    %v24 = vld [vmem:[%s1 + $0x18] sm:$0xff]
    %26 = vset.pattern.permute.xlu0 0
    %27 = vperm.xlu0 %26, %v21
    %v28 = vpop.permute.xlu0 %27
    %31 = vset.pattern.permute.xlu0 0
    %32 = vperm.xlu0 %31, %v22
    %v33 = vpop.permute.xlu0 %32
    %36 = vset.pattern.permute.xlu0 0
    %37 = vperm.xlu0 %36, %v23
    %v38 = vpop.permute.xlu0 %37
    %41 = vset.pattern.permute.xlu0 0
    %42 = vperm.xlu0 %41, %v24
    %v43 = vpop.permute.xlu0 %42
    %vm45 = vcmask 97280
    %v47 = vsel %vm45, %v15, 0
    %v50 = vsel %vm45, %v16, 0
    %v53 = vsel %vm45, %v17, 0
    %v56 = vsel %vm45, %v18, 0
    %vm58 = vcmask 1043456
    %v60 = vsel %vm58, %v20, 0
    %62 = vmatpush.msra.mxu0 0.0
    %63 = vmatpush.msra.mxu0 0.0
    %64 = vmatpush.msra.mxu0 0.0
    %65 = vmatpush.msra.mxu0 0.0
    %66 = vmatpush.msra.mxu0 0.0
    %67 = vmatpush.msra.mxu0 0.0
    %68 = vmatpush.msra.mxu0 0.0
    %69 = vmatpush.msra.mxu0 0.0
    %70 = vmatpush.msra.mxu0 0.0
    %71 = vmatpush.msra.mxu0 0.0
    %72 = vmatpush.msra.mxu0 0.0
    %73 = vmatpush.msra.mxu0 0.0
    %74 = vmatpush.msra.mxu0 0.0
    %75 = vmatpush.msra.mxu0 0.0
    %76 = vmatpush.msra.mxu0 %v60
    %77 = vmatpush.msra.mxu0 %v19
    %78 = vmatmul.f32.gmra.mxu0 %v47
    %v79 = vpop.f32.mrf.mxu0
    %v80 = vadd.f32 %v28, %v79
    %81 = vmatmul.f32.gmra.mxu0 %v50
    %v82 = vpop.f32.mrf.mxu0
    %v83 = vadd.f32 %v33, %v82
    %84 = vmatmul.f32.gmra.mxu0 %v53
    %v85 = vpop.f32.mrf.mxu0
    %v86 = vadd.f32 %v38, %v85
    %87 = vmatmul.f32.gmra.mxu0 %v56
    %v88 = vpop.f32.mrf.mxu0
    %v89 = vadd.f32 %v43, %v88
    %90 = vdwg.mxu0
    %v91 = vmax.f32 %v80, 0.0
    %v92 = vmax.f32 %v83, 0.0
    %v93 = vmax.f32 %v86, 0.0
    %v94 = vmax.f32 %v89, 0.0
    %95 = vst [vmem:[#allocation2] sm:$0xff] %v91
    %96 = vst [vmem:[#allocation2 + $0x8] sm:$0xff] %v92
    %97 = vst [vmem:[#allocation2 + $0x10] sm:$0xff] %v93
    %98 = vst [vmem:[#allocation2 + $0x18] sm:$0xff] %v94
    // Predicated region
    $region14: #{tpu_custom_call.1} parent=1 // pred_check
      _
    $region15: #{tpu_custom_call.1} parent=1 // pred_check_branch
      %100 = sbr.rel (0) target = $region17
    $region16: #{tpu_custom_call.1} parent=1 // pred_region
      %102 = vsyncadd [#allocation3], 0
      %s103 = sshll.u32 [#allocation2], 4
      %s104 = int_to_ptr.vmem [resolvable:$true] %s103
      %s105 = sshll.u32 %s3, 4
      %s106 = int_to_ptr.hbm [resolvable:$true] %s105
      %111 = dma.vmem_to_hbm [thread:$0]  %s104, 512, %s106, [#allocation3], 128, 128, 8
    $region17: #{tpu_custom_call.1} parent=1 // pred_fallthru
      _
    // Predicated region
    $region18: #{tpu_custom_call.1} parent=1 // pred_check
      _
    $region19: #{tpu_custom_call.1} parent=1 // pred_check_branch
      %113 = sbr.rel (0) target = $region21
    $region20: #{tpu_custom_call.1} parent=1 // pred_region
      %115 = dma.done [#allocation3], 512
    $region21: #{tpu_custom_call.1} parent=1 // pred_fallthru
      _
    %116 = vsyncpa [#allocation3], 1

</llo_original>
